<compile_context>
chip_gen: v5e
topology: v5e:2x2
jax: 0.10.0
libtpu: 0.0.40
codegen_flags: <defaults>
</compile_context>

<pallas_src>
import functools

import jax
import jax.numpy as jnp
import numpy as np
from jax.experimental import pallas as pl
from jax.experimental.pallas import tpu as pltpu

BN_EPS = 1e-5
LANE = 128
SUBLANE_PACK = 16  # bf16 sublane pack: minimum second-to-last tile dim


def _round_up(x, m):
    return (x + m - 1) // m * m


def _fusion_kernel(seq_ref, img_ref,
                   ws_ref, bs_ref,
                   wi_ref, bi_ref,
                   wo_ref, bo_ref,
                   out_ref, acc_ref, *, prod_dtype):
    """One (batch-tile, hidden-K-tile) step of the fused forward pass."""
    k = pl.program_id(1)

    @pl.when(k == 0)
    def _():
        acc_ref[...] = jnp.zeros_like(acc_ref)

    # SeqTrans / ImgTrans on this K block: MXU matmuls, f32 accumulation + bias.
    s = jnp.dot(seq_ref[...], ws_ref[...],
                preferred_element_type=jnp.float32) + bs_ref[...]
    i = jnp.dot(img_ref[...], wi_ref[...],
                preferred_element_type=jnp.float32) + bi_ref[...]

    # Hadamard-product bilinear fusion + tanh (Dropout = Identity).
    # prod_dtype is bf16 on v6e/v7x (bf16 EUP), f32 on v5e / f32 mode.
    prod = jnp.tanh((s * i).astype(prod_dtype))

    # OutTrans (eval-mode BN already folded into wo/bo), accumulated over K.
    acc_ref[...] += jnp.dot(prod.astype(wo_ref.dtype), wo_ref[...],
                            preferred_element_type=jnp.float32)

    @pl.when(k == pl.num_programs(1) - 1)
    def _():
        # Bias + ReLU epilogue; single store of the lane-dense output tile.
        out_ref[...] = jnp.maximum(acc_ref[...] + bo_ref[...],
                                   0.0).astype(out_ref.dtype)


def _pack_params(params, compute_dtype):
    """Fold eval-mode BN (running stats + affine) into OutTrans, pad hidden/output
    dims to multiples of 128, cast MXU operands to compute_dtype."""
    ws, bs, wi, bi, wo, bo, gamma, beta, run_mean, run_var = params
    hidden = ws.shape[1]
    out_dim = wo.shape[1]

    # BN(z) = (z - mean) / sqrt(var + eps) * gamma + beta, with z = x @ wo + bo
    #  -> wo_eff = wo * scale,  bo_eff = bo * scale + (beta - mean * scale)
    scale = (gamma / jnp.sqrt(run_var + BN_EPS)).astype(jnp.float32)
    wo_eff = wo.astype(jnp.float32) * scale
    bo_eff = bo.astype(jnp.float32) * scale + (beta - run_mean * scale)

    hp = _round_up(hidden, LANE)
    op = _round_up(out_dim, LANE)

    # Zero padding is mathematically exact: padded ws/wi columns and bias entries
    # are 0 -> prod_pad = tanh(0*0) = 0; padded wo rows/cols are 0; padded output
    # columns are sliced off by the wrapper.
    def pad2(x, rows, cols):
        return jnp.pad(x, ((0, rows - x.shape[0]), (0, cols - x.shape[1])))

    ws_p = pad2(ws, ws.shape[0], hp).astype(compute_dtype)
    wi_p = pad2(wi, wi.shape[0], hp).astype(compute_dtype)
    wo_p = pad2(wo_eff, hp, op).astype(compute_dtype)
    bs_p = pad2(bs, 1, hp).astype(jnp.float32)
    bi_p = pad2(bi, 1, hp).astype(jnp.float32)
    bo_p = pad2(bo_eff, 1, op).astype(jnp.float32)
    return (ws_p, bs_p, wi_p, bi_p, wo_p, bo_p), hp, op


def _tpu_caps():
    """(physical_vmem_bytes, default_scoped_vmem_bytes, is_v5, is_v7)."""
    kind = ""
    try:
        kind = jax.devices()[0].device_kind.lower()
    except Exception:
        pass
    is_v5 = "v5" in kind
    is_v7 = "v7" in kind
    try:
        phys = int(pltpu.get_tpu_info().vmem_capacity_bytes)
    except Exception:
        phys = (64 << 20) if is_v7 else (128 << 20)
    default_scoped = (16 << 20) if is_v5 else (32 << 20)
    return phys, default_scoped, is_v5, is_v7


def hdm_prod_bilinear_fusion(seq, img, params, *, batch_tile=512,
                             compute_dtype=jnp.bfloat16, out_dtype=jnp.float32):
    """seq: [B, seq_dim], img: [B, img_dim] -> [B, output_dim] (out_dtype)."""
    B, seq_dim = seq.shape
    _, img_dim = img.shape
    out_dim = params[4].shape[1]

    (ws, bs, wi, bi, wo, bo), hp, op = _pack_params(params, compute_dtype)

    cbytes = np.dtype(compute_dtype).itemsize
    obytes = np.dtype(out_dtype).itemsize
    phys_vmem, default_scoped, is_v5, is_v7 = _tpu_caps()

    # tanh/Hadamard epilogue dtype: bf16 on v6e/v7x, f32 on v5e or in f32 mode.
    if np.dtype(compute_dtype) == np.dtype(jnp.float32) or is_v5:
        prod_dtype = jnp.float32
    else:
        prod_dtype = compute_dtype
    pbytes = np.dtype(prod_dtype).itemsize

    # Generation-aware scoped-VMEM ceiling (headroom for Mosaic internal scratch,
    # semaphores, and anything the model below misses).
    if is_v7:
        vmem_cap = min(phys_vmem - (16 << 20), 48 << 20)
    else:
        vmem_cap = min(phys_vmem - (28 << 20), 100 << 20)
    vmem_cap = max(vmem_cap, default_scoped)

    def vmem_need(bt, tk, single_buffer_weights):
        nk = hp // tk
        act = 2 * bt * (seq_dim + img_dim) * cbytes           # double-buffered inputs
        outb = 2 * bt * op * obytes                           # double-buffered output
        wbuf = 1 if (single_buffer_weights and nk == 1) else 2
        weights = wbuf * ((seq_dim + img_dim) * tk + tk * op) * cbytes
        biases = wbuf * (2 * tk + op) * 4
        inter = bt * tk * (4 + 4 + pbytes) + bt * op * 4      # s, i, prod, acc scratch
        return act + outb + weights + biases + inter

    # ---- tile selection -----------------------------------------------------
    B16 = _round_up(B, SUBLANE_PACK)

    # K-tile candidates: lane-dense multiples of 128 that divide the padded hidden.
    tk_cands = [c for c in range(hp, 0, -LANE) if hp % c == 0]

    # Batch-tile candidates: requested tile downwards, 16-aligned (bf16 sublanes),
    # hitting the MXU-friendly 256/128 multiples on the way down.
    bt0 = max(SUBLANE_PACK, min(_round_up(batch_tile, SUBLANE_PACK), B16))
    bt_cands = []
    cand = bt0
    while True:
        bt_cands.append(cand)
        if cand <= SUBLANE_PACK:
            break
        cand = max(SUBLANE_PACK, (cand // 2) - ((cand // 2) % SUBLANE_PACK))

    chosen = None
    for cand_bt in bt_cands:                  # prefer the biggest batch tile ...
        for cand_tk in tk_cands:              # ... then the biggest K tile that fits
            if vmem_need(cand_bt, cand_tk, True) <= vmem_cap:
                chosen = (cand_bt, cand_tk)
                break
        if chosen is not None:
            break
    bt, tk = chosen if chosen is not None else (SUBLANE_PACK, LANE)

    # Shrink bt when full-tile batch padding would waste >12.5% extra work.
    while bt > SUBLANE_PACK and (_round_up(B16, bt) - B16) * 8 > B16:
        bt = max(SUBLANE_PACK, (bt // 2) - ((bt // 2) % SUBLANE_PACK))

    # v7x has 2 TensorCores: ensure the "parallel" batch axis has >= 2 steps.
    if is_v7 and _round_up(B16, bt) // bt < 2 and bt >= 2 * SUBLANE_PACK:
        bt = max(SUBLANE_PACK, (bt // 2) - ((bt // 2) % SUBLANE_PACK))

    Bp = _round_up(B16, bt)
    nb, nk = Bp // bt, hp // tk

    # ---- operand prep -------------------------------------------------------
    if Bp != B:
        seq = jnp.pad(seq, ((0, Bp - B), (0, 0)))
        img = jnp.pad(img, ((0, Bp - B), (0, 0)))
    seq = seq.astype(compute_dtype)
    img = img.astype(compute_dtype)

    vmem_needed = vmem_need(bt, tk, True)
    vmem_limit = int(min(max(vmem_needed * 5 // 4 + (2 << 20), default_scoped),
                         vmem_cap))

    weight_hbm_bytes = ((ws.size + wi.size + wo.size) * cbytes
                        + (bs.size + bi.size + bo.size) * 4)
    cost = pl.CostEstimate(
        flops=2 * Bp * (seq_dim * hp + img_dim * hp + hp * op),
        transcendentals=Bp * hp,
        bytes_accessed=int(Bp * (seq_dim + img_dim) * cbytes
                           + nb * weight_hbm_bytes + Bp * op * obytes),
    )

    def make_call(single_buffer_weights):
        def wspec(shape, index_map, invariant):
            if single_buffer_weights and invariant:
                # Grid-invariant operand: fetched once, single VMEM buffer.
                return pl.BlockSpec(shape, index_map, pipeline_mode=pl.Buffered(1))
            return pl.BlockSpec(shape, index_map)

        grid_spec = pltpu.PrefetchScalarGridSpec(
            num_scalar_prefetch=0,
            grid=(nb, nk),
            in_specs=[
                pl.BlockSpec((bt, seq_dim), lambda b, k: (b, 0)),     # seq tile
                pl.BlockSpec((bt, img_dim), lambda b, k: (b, 0)),     # img tile
                wspec((seq_dim, tk), lambda b, k: (0, k), nk == 1),   # Ws^T
                wspec((1, tk),       lambda b, k: (0, k), nk == 1),   # bs
                wspec((img_dim, tk), lambda b, k: (0, k), nk == 1),   # Wi^T
                wspec((1, tk),       lambda b, k: (0, k), nk == 1),   # bi
                wspec((tk, op),      lambda b, k: (k, 0), nk == 1),   # Wo^T (BN folded)
                wspec((1, op),       lambda b, k: (0, 0), True),      # bo  (BN folded)
            ],
            out_specs=pl.BlockSpec((bt, op), lambda b, k: (b, 0)),
            scratch_shapes=[pltpu.VMEM((bt, op), jnp.float32)],
        )
        return pl.pallas_call(
            functools.partial(_fusion_kernel, prod_dtype=prod_dtype),
            out_shape=jax.ShapeDtypeStruct((Bp, op), out_dtype),
            grid_spec=grid_spec,
            compiler_params=pltpu.CompilerParams(
                dimension_semantics=("parallel", "arbitrary"),
                vmem_limit_bytes=vmem_limit),
            cost_estimate=cost,
        )

    args = (seq, img, ws, bs, wi, bi, wo, bo)
    try:
        out = make_call(True)(*args)
    except Exception:
        # pl.Buffered(1) not supported by this jax/Mosaic build -> default buffering.
        out = make_call(False)(*args)

    return out[:B, :out_dim]


def init_params(key, seq_dim, img_dim, hidden_dim, output_dim):
    """Deterministic init mimicking nn.Linear default (U(-1/sqrt(in), 1/sqrt(in)))
    plus BatchNorm1d affine params and running stats (fresh module: mean=0, var=1)."""
    ks = jax.random.split(key, 6)

    def linear(kw, kb, fan_in, fan_out):
        bound = 1.0 / jnp.sqrt(jnp.float32(fan_in))
        w = jax.random.uniform(kw, (fan_in, fan_out), jnp.float32, -bound, bound)  # W^T
        b = jax.random.uniform(kb, (1, fan_out), jnp.float32, -bound, bound)
        return w, b

    ws, bs = linear(ks[0], ks[1], seq_dim, hidden_dim)
    wi, bi = linear(ks[2], ks[3], img_dim, hidden_dim)
    wo, bo = linear(ks[4], ks[5], hidden_dim, output_dim)
    gamma = jnp.ones((1, output_dim), jnp.float32)       # BN affine weight
    beta = jnp.zeros((1, output_dim), jnp.float32)       # BN affine bias
    run_mean = jnp.zeros((1, output_dim), jnp.float32)   # BN running_mean
    run_var = jnp.ones((1, output_dim), jnp.float32)     # BN running_var
    return (ws, bs, wi, bi, wo, bo, gamma, beta, run_mean, run_var)


def reference(seq, img, params):
    """Pure-JAX f32 reference matching the PyTorch module in eval mode."""
    ws, bs, wi, bi, wo, bo, gamma, beta, run_mean, run_var = params
    prod = jnp.tanh((seq @ ws + bs) * (img @ wi + bi))
    o = prod @ wo + bo
    o = (o - run_mean) / jnp.sqrt(run_var + BN_EPS) * gamma + beta
    return jnp.maximum(o, 0.0)


if __name__ == "__main__":
    B, seq_dim, img_dim, hidden_dim, output_dim = 8, 32, 48, 64, 128

    key = jax.random.PRNGKey(0)
    k_seq, k_img, k_par = jax.random.split(key, 3)
    seq = jax.random.normal(k_seq, (B, seq_dim), jnp.float32)
    img = jax.random.normal(k_img, (B, img_dim), jnp.float32)
    params = init_params(k_par, seq_dim, img_dim, hidden_dim, output_dim)

    out = hdm_prod_bilinear_fusion(seq, img, params)
    out = jax.block_until_ready(out)

    ref = reference(seq, img, params)
    assert out.shape == (B, output_dim)
    # bf16 MXU operands / bf16 tanh (f32 accumulation) -> relaxed tolerance vs f32 ref.
    assert jnp.allclose(out, ref, atol=5e-2, rtol=5e-2), "mismatch vs reference"

    print("KERNEL_OK")
</pallas_src>

<mosaic_0001>
module attributes {stable_mosaic.version = 11 : i64} {
  func.func @_fusion_kernel(%arg0: i32, %arg1: i32, %arg2: memref<16x32xbf16, #tpu.memory_space<vmem>>, %arg3: memref<16x48xbf16, #tpu.memory_space<vmem>>, %arg4: memref<32x128xbf16, #tpu.memory_space<vmem>>, %arg5: memref<1x128xf32, #tpu.memory_space<vmem>>, %arg6: memref<48x128xbf16, #tpu.memory_space<vmem>>, %arg7: memref<1x128xf32, #tpu.memory_space<vmem>>, %arg8: memref<128x128xbf16, #tpu.memory_space<vmem>>, %arg9: memref<1x128xf32, #tpu.memory_space<vmem>>, %arg10: memref<16x128xf32, #tpu.memory_space<vmem>>, %arg11: memref<16x128xf32, #tpu.memory_space<vmem>>) attributes {dimension_semantics = [#tpu.dimension_semantics<parallel>, #tpu.dimension_semantics<arbitrary>], iteration_bounds = array<i64: 1, 1>, scalar_prefetch = 0 : i64, scratch_operands = 1 : i64, tpu.core_type = #tpu.core_type<tc>, window_params = [{transform_indices = @transform_0, window_bounds = array<i64: 16, 32>}, {transform_indices = @transform_1, window_bounds = array<i64: 16, 48>}, {pipeline_mode = #tpu.pipeline_mode<synchronous>, transform_indices = @transform_2, window_bounds = array<i64: 32, 128>}, {pipeline_mode = #tpu.pipeline_mode<synchronous>, transform_indices = @transform_3, window_bounds = array<i64: 1, 128>}, {pipeline_mode = #tpu.pipeline_mode<synchronous>, transform_indices = @transform_4, window_bounds = array<i64: 48, 128>}, {pipeline_mode = #tpu.pipeline_mode<synchronous>, transform_indices = @transform_5, window_bounds = array<i64: 1, 128>}, {pipeline_mode = #tpu.pipeline_mode<synchronous>, transform_indices = @transform_6, window_bounds = array<i64: 128, 128>}, {pipeline_mode = #tpu.pipeline_mode<synchronous>, transform_indices = @transform_7, window_bounds = array<i64: 1, 128>}, {transform_indices = @transform_8, window_bounds = array<i64: 16, 128>}]} {
    %c0_i32 = arith.constant 0 : i32
    %0 = arith.cmpi eq, %arg1, %c0_i32 : i32
    %1 = arith.extui %0 : i1 to i32
    %c0_i32_0 = arith.constant 0 : i32
    %2 = arith.cmpi ne, %1, %c0_i32_0 : i32
    scf.if %2 {
      %cst_22 = arith.constant 0.000000e+00 : f32
      %26 = vector.broadcast %cst_22 : f32 to vector<16x128xf32>
      %c0_23 = arith.constant 0 : index
      %c0_24 = arith.constant 0 : index
      %27 = vector.load %arg11[%c0_23, %c0_24] : memref<16x128xf32, #tpu.memory_space<vmem>>, vector<16x128xf32>
      tpu.vector_store %arg11[%c0_23, %c0_24], %26 {strides = array<i32>} : memref<16x128xf32, #tpu.memory_space<vmem>>, vector<16x128xf32>,
    } else {
    }
    %c0 = arith.constant 0 : index
    %c0_1 = arith.constant 0 : index
    %3 = vector.load %arg2[%c0, %c0_1] : memref<16x32xbf16, #tpu.memory_space<vmem>>, vector<16x32xbf16>
    %c0_2 = arith.constant 0 : index
    %c0_3 = arith.constant 0 : index
    %4 = vector.load %arg4[%c0_2, %c0_3] : memref<32x128xbf16, #tpu.memory_space<vmem>>, vector<32x128xbf16>
    %cst = arith.constant dense<0.000000e+00> : vector<16x128xf32>
    %5 = tpu.matmul %3, %4, %cst {dimension_numbers = #tpu.dot_dimension_numbers<[1], [0], [0], [1], [0, 0, 1, 1], [], []>} : vector<16x32xbf16>, vector<32x128xbf16>, vector<16x128xf32> -> vector<16x128xf32>
    %c0_4 = arith.constant 0 : index
    %c0_5 = arith.constant 0 : index
    %6 = vector.load %arg5[%c0_4, %c0_5] : memref<1x128xf32, #tpu.memory_space<vmem>>, vector<1x128xf32>
    %7 = vector.broadcast %6 : vector<1x128xf32> to vector<16x128xf32>
    %8 = arith.addf %5, %7 : vector<16x128xf32>
    %c0_6 = arith.constant 0 : index
    %c0_7 = arith.constant 0 : index
    %9 = vector.load %arg3[%c0_6, %c0_7] : memref<16x48xbf16, #tpu.memory_space<vmem>>, vector<16x48xbf16>
    %c0_8 = arith.constant 0 : index
    %c0_9 = arith.constant 0 : index
    %10 = vector.load %arg6[%c0_8, %c0_9] : memref<48x128xbf16, #tpu.memory_space<vmem>>, vector<48x128xbf16>
    %cst_10 = arith.constant dense<0.000000e+00> : vector<16x128xf32>
    %11 = tpu.matmul %9, %10, %cst_10 {dimension_numbers = #tpu.dot_dimension_numbers<[1], [0], [0], [1], [0, 0, 1, 1], [], []>} : vector<16x48xbf16>, vector<48x128xbf16>, vector<16x128xf32> -> vector<16x128xf32>
    %c0_11 = arith.constant 0 : index
    %c0_12 = arith.constant 0 : index
    %12 = vector.load %arg7[%c0_11, %c0_12] : memref<1x128xf32, #tpu.memory_space<vmem>>, vector<1x128xf32>
    %13 = vector.broadcast %12 : vector<1x128xf32> to vector<16x128xf32>
    %14 = arith.addf %11, %13 : vector<16x128xf32>
    %15 = arith.mulf %8, %14 : vector<16x128xf32>
    %16 = arith.truncf %15 : vector<16x128xf32> to vector<16x128xbf16>
    %17 = math.tanh %16 : vector<16x128xbf16>
    %c0_13 = arith.constant 0 : index
    %c0_14 = arith.constant 0 : index
    %18 = vector.load %arg11[%c0_13, %c0_14] : memref<16x128xf32, #tpu.memory_space<vmem>>, vector<16x128xf32>
    %c0_15 = arith.constant 0 : index
    %c0_16 = arith.constant 0 : index
    %19 = vector.load %arg8[%c0_15, %c0_16] : memref<128x128xbf16, #tpu.memory_space<vmem>>, vector<128x128xbf16>
    %cst_17 = arith.constant dense<0.000000e+00> : vector<16x128xf32>
    %20 = tpu.matmul %17, %19, %cst_17 {dimension_numbers = #tpu.dot_dimension_numbers<[1], [0], [0], [1], [0, 0, 1, 1], [], []>} : vector<16x128xbf16>, vector<128x128xbf16>, vector<16x128xf32> -> vector<16x128xf32>
    %21 = arith.addf %18, %20 : vector<16x128xf32>
    %c0_18 = arith.constant 0 : index
    %c0_19 = arith.constant 0 : index
    %22 = vector.load %arg11[%c0_18, %c0_19] : memref<16x128xf32, #tpu.memory_space<vmem>>, vector<16x128xf32>
    tpu.vector_store %arg11[%c0_18, %c0_19], %21 {strides = array<i32>} : memref<16x128xf32, #tpu.memory_space<vmem>>, vector<16x128xf32>,
    %c0_i32_20 = arith.constant 0 : i32
    %23 = arith.cmpi eq, %arg1, %c0_i32_20 : i32
    %24 = arith.extui %23 : i1 to i32
    %c0_i32_21 = arith.constant 0 : i32
    %25 = arith.cmpi ne, %24, %c0_i32_21 : i32
    scf.if %25 {
      %c0_22 = arith.constant 0 : index
      %c0_23 = arith.constant 0 : index
      %26 = vector.load %arg11[%c0_22, %c0_23] : memref<16x128xf32, #tpu.memory_space<vmem>>, vector<16x128xf32>
      %c0_24 = arith.constant 0 : index
      %c0_25 = arith.constant 0 : index
      %27 = vector.load %arg9[%c0_24, %c0_25] : memref<1x128xf32, #tpu.memory_space<vmem>>, vector<1x128xf32>
      %28 = vector.broadcast %27 : vector<1x128xf32> to vector<16x128xf32>
      %29 = arith.addf %26, %28 : vector<16x128xf32>
      %cst_26 = arith.constant 0.000000e+00 : f32
      %30 = vector.broadcast %cst_26 : f32 to vector<16x128xf32>
      %31 = arith.maximumf %29, %30 : vector<16x128xf32>
      %c0_27 = arith.constant 0 : index
      %c0_28 = arith.constant 0 : index
      %32 = vector.load %arg10[%c0_27, %c0_28] : memref<16x128xf32, #tpu.memory_space<vmem>>, vector<16x128xf32>
      tpu.vector_store %arg10[%c0_27, %c0_28], %31 {strides = array<i32>} : memref<16x128xf32, #tpu.memory_space<vmem>>, vector<16x128xf32>,
    } else {
    }
    return
  }
  func.func @transform_0(%arg0: i32, %arg1: i32) -> (i32, i32) {
    %c0_i32 = arith.constant 0 : i32
    %c0_i32_0 = arith.constant 0 : i32
    return %arg0, %c0_i32 : i32, i32
  }
  func.func @transform_1(%arg0: i32, %arg1: i32) -> (i32, i32) {
    %c0_i32 = arith.constant 0 : i32
    %c0_i32_0 = arith.constant 0 : i32
    return %arg0, %c0_i32 : i32, i32
  }
  func.func @transform_2(%arg0: i32, %arg1: i32) -> (i32, i32) {
    %c0_i32 = arith.constant 0 : i32
    %c0_i32_0 = arith.constant 0 : i32
    return %c0_i32, %arg1 : i32, i32
  }
  func.func @transform_3(%arg0: i32, %arg1: i32) -> (i32, i32) {
    %c0_i32 = arith.constant 0 : i32
    %c0_i32_0 = arith.constant 0 : i32
    return %c0_i32, %arg1 : i32, i32
  }
  func.func @transform_4(%arg0: i32, %arg1: i32) -> (i32, i32) {
    %c0_i32 = arith.constant 0 : i32
    %c0_i32_0 = arith.constant 0 : i32
    return %c0_i32, %arg1 : i32, i32
  }
  func.func @transform_5(%arg0: i32, %arg1: i32) -> (i32, i32) {
    %c0_i32 = arith.constant 0 : i32
    %c0_i32_0 = arith.constant 0 : i32
    return %c0_i32, %arg1 : i32, i32
  }
  func.func @transform_6(%arg0: i32, %arg1: i32) -> (i32, i32) {
    %c0_i32 = arith.constant 0 : i32
    %c0_i32_0 = arith.constant 0 : i32
    return %arg1, %c0_i32 : i32, i32
  }
  func.func @transform_7(%arg0: i32, %arg1: i32) -> (i32, i32) {
    %c0_i32 = arith.constant 0 : i32
    %c0_i32_0 = arith.constant 0 : i32
    %c0_i32_1 = arith.constant 0 : i32
    return %c0_i32, %c0_i32_0 : i32, i32
  }
  func.func @transform_8(%arg0: i32, %arg1: i32) -> (i32, i32) {
    %c0_i32 = arith.constant 0 : i32
    %c0_i32_0 = arith.constant 0 : i32
    return %arg0, %c0_i32 : i32, i32
  }
}

module attributes {stable_mosaic.version = 11 : i64} {
  func.func @_fusion_kernel(%arg0: i32, %arg1: i32, %arg2: memref<16x32xbf16, #tpu.memory_space<vmem>>, %arg3: memref<16x48xbf16, #tpu.memory_space<vmem>>, %arg4: memref<32x128xbf16, #tpu.memory_space<vmem>>, %arg5: memref<1x128xf32, #tpu.memory_space<vmem>>, %arg6: memref<48x128xbf16, #tpu.memory_space<vmem>>, %arg7: memref<1x128xf32, #tpu.memory_space<vmem>>, %arg8: memref<128x128xbf16, #tpu.memory_space<vmem>>, %arg9: memref<1x128xf32, #tpu.memory_space<vmem>>, %arg10: memref<16x128xf32, #tpu.memory_space<vmem>>, %arg11: memref<16x128xf32, #tpu.memory_space<vmem>>) attributes {dimension_semantics = [#tpu.dimension_semantics<parallel>, #tpu.dimension_semantics<arbitrary>], iteration_bounds = array<i64: 1, 1>, scalar_prefetch = 0 : i64, scratch_operands = 1 : i64, tpu.core_type = #tpu.core_type<tc>, window_params = [{transform_indices = @transform_0, window_bounds = array<i64: 16, 32>}, {transform_indices = @transform_1, window_bounds = array<i64: 16, 48>}, {transform_indices = @transform_2, window_bounds = array<i64: 32, 128>}, {transform_indices = @transform_3, window_bounds = array<i64: 1, 128>}, {transform_indices = @transform_4, window_bounds = array<i64: 48, 128>}, {transform_indices = @transform_5, window_bounds = array<i64: 1, 128>}, {transform_indices = @transform_6, window_bounds = array<i64: 128, 128>}, {pipeline_mode = #tpu.pipeline_mode<synchronous>, transform_indices = @transform_7, window_bounds = array<i64: 1, 128>}, {transform_indices = @transform_8, window_bounds = array<i64: 16, 128>}]} {
    %c0_i32 = arith.constant 0 : i32
    %0 = arith.cmpi eq, %arg1, %c0_i32 : i32
    %1 = arith.extui %0 : i1 to i32
    %c0_i32_0 = arith.constant 0 : i32
    %2 = arith.cmpi ne, %1, %c0_i32_0 : i32
    scf.if %2 {
      %cst_22 = arith.constant 0.000000e+00 : f32
      %26 = vector.broadcast %cst_22 : f32 to vector<16x128xf32>
      %c0_23 = arith.constant 0 : index
      %c0_24 = arith.constant 0 : index
      %27 = vector.load %arg11[%c0_23, %c0_24] : memref<16x128xf32, #tpu.memory_space<vmem>>, vector<16x128xf32>
      tpu.vector_store %arg11[%c0_23, %c0_24], %26 {strides = array<i32>} : memref<16x128xf32, #tpu.memory_space<vmem>>, vector<16x128xf32>,
    } else {
    }
    %c0 = arith.constant 0 : index
    %c0_1 = arith.constant 0 : index
    %3 = vector.load %arg2[%c0, %c0_1] : memref<16x32xbf16, #tpu.memory_space<vmem>>, vector<16x32xbf16>
    %c0_2 = arith.constant 0 : index
    %c0_3 = arith.constant 0 : index
    %4 = vector.load %arg4[%c0_2, %c0_3] : memref<32x128xbf16, #tpu.memory_space<vmem>>, vector<32x128xbf16>
    %cst = arith.constant dense<0.000000e+00> : vector<16x128xf32>
    %5 = tpu.matmul %3, %4, %cst {dimension_numbers = #tpu.dot_dimension_numbers<[1], [0], [0], [1], [0, 0, 1, 1], [], []>} : vector<16x32xbf16>, vector<32x128xbf16>, vector<16x128xf32> -> vector<16x128xf32>
    %c0_4 = arith.constant 0 : index
    %c0_5 = arith.constant 0 : index
    %6 = vector.load %arg5[%c0_4, %c0_5] : memref<1x128xf32, #tpu.memory_space<vmem>>, vector<1x128xf32>
    %7 = vector.broadcast %6 : vector<1x128xf32> to vector<16x128xf32>
    %8 = arith.addf %5, %7 : vector<16x128xf32>
    %c0_6 = arith.constant 0 : index
    %c0_7 = arith.constant 0 : index
    %9 = vector.load %arg3[%c0_6, %c0_7] : memref<16x48xbf16, #tpu.memory_space<vmem>>, vector<16x48xbf16>
    %c0_8 = arith.constant 0 : index
    %c0_9 = arith.constant 0 : index
    %10 = vector.load %arg6[%c0_8, %c0_9] : memref<48x128xbf16, #tpu.memory_space<vmem>>, vector<48x128xbf16>
    %cst_10 = arith.constant dense<0.000000e+00> : vector<16x128xf32>
    %11 = tpu.matmul %9, %10, %cst_10 {dimension_numbers = #tpu.dot_dimension_numbers<[1], [0], [0], [1], [0, 0, 1, 1], [], []>} : vector<16x48xbf16>, vector<48x128xbf16>, vector<16x128xf32> -> vector<16x128xf32>
    %c0_11 = arith.constant 0 : index
    %c0_12 = arith.constant 0 : index
    %12 = vector.load %arg7[%c0_11, %c0_12] : memref<1x128xf32, #tpu.memory_space<vmem>>, vector<1x128xf32>
    %13 = vector.broadcast %12 : vector<1x128xf32> to vector<16x128xf32>
    %14 = arith.addf %11, %13 : vector<16x128xf32>
    %15 = arith.mulf %8, %14 : vector<16x128xf32>
    %16 = arith.truncf %15 : vector<16x128xf32> to vector<16x128xbf16>
    %17 = math.tanh %16 : vector<16x128xbf16>
    %c0_13 = arith.constant 0 : index
    %c0_14 = arith.constant 0 : index
    %18 = vector.load %arg11[%c0_13, %c0_14] : memref<16x128xf32, #tpu.memory_space<vmem>>, vector<16x128xf32>
    %c0_15 = arith.constant 0 : index
    %c0_16 = arith.constant 0 : index
    %19 = vector.load %arg8[%c0_15, %c0_16] : memref<128x128xbf16, #tpu.memory_space<vmem>>, vector<128x128xbf16>
    %cst_17 = arith.constant dense<0.000000e+00> : vector<16x128xf32>
    %20 = tpu.matmul %17, %19, %cst_17 {dimension_numbers = #tpu.dot_dimension_numbers<[1], [0], [0], [1], [0, 0, 1, 1], [], []>} : vector<16x128xbf16>, vector<128x128xbf16>, vector<16x128xf32> -> vector<16x128xf32>
    %21 = arith.addf %18, %20 : vector<16x128xf32>
    %c0_18 = arith.constant 0 : index
    %c0_19 = arith.constant 0 : index
    %22 = vector.load %arg11[%c0_18, %c0_19] : memref<16x128xf32, #tpu.memory_space<vmem>>, vector<16x128xf32>
    tpu.vector_store %arg11[%c0_18, %c0_19], %21 {strides = array<i32>} : memref<16x128xf32, #tpu.memory_space<vmem>>, vector<16x128xf32>,
    %c0_i32_20 = arith.constant 0 : i32
    %23 = arith.cmpi eq, %arg1, %c0_i32_20 : i32
    %24 = arith.extui %23 : i1 to i32
    %c0_i32_21 = arith.constant 0 : i32
    %25 = arith.cmpi ne, %24, %c0_i32_21 : i32
    scf.if %25 {
      %c0_22 = arith.constant 0 : index
      %c0_23 = arith.constant 0 : index
      %26 = vector.load %arg11[%c0_22, %c0_23] : memref<16x128xf32, #tpu.memory_space<vmem>>, vector<16x128xf32>
      %c0_24 = arith.constant 0 : index
      %c0_25 = arith.constant 0 : index
      %27 = vector.load %arg9[%c0_24, %c0_25] : memref<1x128xf32, #tpu.memory_space<vmem>>, vector<1x128xf32>
      %28 = vector.broadcast %27 : vector<1x128xf32> to vector<16x128xf32>
      %29 = arith.addf %26, %28 : vector<16x128xf32>
      %cst_26 = arith.constant 0.000000e+00 : f32
      %30 = vector.broadcast %cst_26 : f32 to vector<16x128xf32>
      %31 = arith.maximumf %29, %30 : vector<16x128xf32>
      %c0_27 = arith.constant 0 : index
      %c0_28 = arith.constant 0 : index
      %32 = vector.load %arg10[%c0_27, %c0_28] : memref<16x128xf32, #tpu.memory_space<vmem>>, vector<16x128xf32>
      tpu.vector_store %arg10[%c0_27, %c0_28], %31 {strides = array<i32>} : memref<16x128xf32, #tpu.memory_space<vmem>>, vector<16x128xf32>,
    } else {
    }
    return
  }
  func.func @transform_0(%arg0: i32, %arg1: i32) -> (i32, i32) {
    %c0_i32 = arith.constant 0 : i32
    %c0_i32_0 = arith.constant 0 : i32
    return %arg0, %c0_i32 : i32, i32
  }
  func.func @transform_1(%arg0: i32, %arg1: i32) -> (i32, i32) {
    %c0_i32 = arith.constant 0 : i32
    %c0_i32_0 = arith.constant 0 : i32
    return %arg0, %c0_i32 : i32, i32
  }
  func.func @transform_2(%arg0: i32, %arg1: i32) -> (i32, i32) {
    %c0_i32 = arith.constant 0 : i32
    %c0_i32_0 = arith.constant 0 : i32
    return %c0_i32, %arg1 : i32, i32
  }
  func.func @transform_3(%arg0: i32, %arg1: i32) -> (i32, i32) {
    %c0_i32 = arith.constant 0 : i32
    %c0_i32_0 = arith.constant 0 : i32
    return %c0_i32, %arg1 : i32, i32
  }
  func.func @transform_4(%arg0: i32, %arg1: i32) -> (i32, i32) {
    %c0_i32 = arith.constant 0 : i32
    %c0_i32_0 = arith.constant 0 : i32
    return %c0_i32, %arg1 : i32, i32
  }
  func.func @transform_5(%arg0: i32, %arg1: i32) -> (i32, i32) {
    %c0_i32 = arith.constant 0 : i32
    %c0_i32_0 = arith.constant 0 : i32
    return %c0_i32, %arg1 : i32, i32
  }
  func.func @transform_6(%arg0: i32, %arg1: i32) -> (i32, i32) {
    %c0_i32 = arith.constant 0 : i32
    %c0_i32_0 = arith.constant 0 : i32
    return %arg1, %c0_i32 : i32, i32
  }
  func.func @transform_7(%arg0: i32, %arg1: i32) -> (i32, i32) {
    %c0_i32 = arith.constant 0 : i32
    %c0_i32_0 = arith.constant 0 : i32
    %c0_i32_1 = arith.constant 0 : i32
    return %c0_i32, %c0_i32_0 : i32, i32
  }
  func.func @transform_8(%arg0: i32, %arg1: i32) -> (i32, i32) {
    %c0_i32 = arith.constant 0 : i32
    %c0_i32_0 = arith.constant 0 : i32
    return %arg0, %c0_i32 : i32, i32
  }
}

</mosaic_0001>

<llo_original>
// kernel: tpu_custom_call.1
$region0: #{tpu_custom_call.1}
  #allocation0 [shape = 'u32[]', space=smem, size = 0x4, offset = 0x4, fixed_abs, tag = 'smem constant byte address 0x4 - core index']
  #allocation1 [shape = 'u32[72,128]{1,0:T(1,128)}', space=vmem, size = 0x9000, scoped, tag = 'internal scratch']
  #allocation2 [shape = 'f32[16,128]{1,0:T(8,128)}', space=vmem, size = 0x2000, scoped, tag = 'scratch operand']
  %s0 = inlined_call_operand.hbm [shape: bf16[16,32], index: 0, kind: input, shape index: {}]
  %s1 = inlined_call_operand.hbm [shape: bf16[16,48], index: 1, kind: input, shape index: {}]
  %s2 = inlined_call_operand.hbm [shape: bf16[32,128], index: 2, kind: input, shape index: {}]
  %s3 = inlined_call_operand.vmem [shape: f32[1,128], index: 3, kind: input, shape index: {}]
  %s4 = inlined_call_operand.hbm [shape: bf16[48,128], index: 4, kind: input, shape index: {}]
  %s5 = inlined_call_operand.vmem [shape: f32[1,128], index: 5, kind: input, shape index: {}]
  %s6 = inlined_call_operand.hbm [shape: bf16[128,128], index: 6, kind: input, shape index: {}]
  %s7 = inlined_call_operand.vmem [shape: f32[1,128], index: 7, kind: input, shape index: {}]
  %s8 = inlined_call_operand.hbm [shape: f32[16,128], index: 8, kind: output, shape index: {}]
  %s9 = sld [smem:[#allocation0]]
  $region70: #{tpu_custom_call.1} parent=0
    _
  %s11 = ssub.s32 1, %s9
  %s12 = scalar_select 0, %s11, %s9
  $region1: #{tpu_custom_call.1} parent=0
    #allocation3 [shape = 'u8[4096]{0}', space=vmem, size = 0x1000, scoped, tag = 'input window, operand 0, single buffered']
    #allocation4 [shape = 's32[1]{0}', space=sflag, size = 0x4, scoped, tag = 'scoped memory for tpu_custom_call.1']
    #allocation5 [shape = 's32[1]{0}', space=sflag, size = 0x4, scoped, tag = 'scoped memory for tpu_custom_call.1']
    #allocation6 [shape = 'u8[4096]{0}', space=vmem, size = 0x1000, scoped, tag = 'input window, operand 1, single buffered']
    #allocation7 [shape = 's32[1]{0}', space=sflag, size = 0x4, scoped, tag = 'scoped memory for tpu_custom_call.1']
    #allocation8 [shape = 'u8[8192]{0}', space=vmem, size = 0x2000, scoped, tag = 'input window, operand 2, single buffered']
    #allocation9 [shape = 'u8[12288]{0}', space=vmem, size = 0x3000, scoped, tag = 'input window, operand 4, single buffered']
    #allocation10 [shape = 's32[1]{0}', space=sflag, size = 0x4, scoped, tag = 'scoped memory for tpu_custom_call.1']
    #allocation11 [shape = 'u8[32768]{0}', space=vmem, size = 0x8000, scoped, tag = 'input window, operand 6, single buffered']
    #allocation12 [shape = 'u8[8192]{0}', space=vmem, size = 0x2000, scoped, tag = 'output window, operand 0, single buffered']
    %13 = vsyncpa [#allocation4], 0
    %14 = vsyncpa [#allocation7], 0
    %15 = vsyncpa [#allocation10], 0
    %16 = vsyncpa [#allocation5], 0
    // Predicated region
    $region2: #{tpu_custom_call.1} parent=1 // pred_check
      _
    $region3: #{tpu_custom_call.1} parent=1 // pred_check_branch
      %18 = sbr.rel (0) target = $region5
    $region4: #{tpu_custom_call.1} parent=1 // pred_region
      %20 = vsyncadd [#allocation4], 0
      %s21 = sshll.u32 %s0, 4
      %s22 = int_to_ptr.hbm [resolvable:$true] %s21
      %s23 = sshll.u32 [#allocation3], 4
      %s24 = int_to_ptr.vmem [resolvable:$true] %s23
      %29 = dma.hbm_to_vmem [thread:$0]  %s22, 128, %s24, [#allocation4], 64, 64, 4
    $region5: #{tpu_custom_call.1} parent=1 // pred_fallthru
      _
    // Predicated region
    $region6: #{tpu_custom_call.1} parent=1 // pred_check
      _
    $region7: #{tpu_custom_call.1} parent=1 // pred_check_branch
      %31 = sbr.rel (0) target = $region9
    $region8: #{tpu_custom_call.1} parent=1 // pred_region
      %33 = vsyncadd [#allocation7], 0
      %s34 = sshll.u32 %s1, 4
      %s35 = int_to_ptr.hbm [resolvable:$true] %s34
      %s36 = sshll.u32 [#allocation6], 4
      %s37 = int_to_ptr.vmem [resolvable:$true] %s36
      %42 = dma.hbm_to_vmem [thread:$0]  %s35, 128, %s37, [#allocation7], 64, 64, 4
    $region9: #{tpu_custom_call.1} parent=1 // pred_fallthru
      _
    // Predicated region
    $region10: #{tpu_custom_call.1} parent=1 // pred_check
      _
    $region11: #{tpu_custom_call.1} parent=1 // pred_check_branch
      %44 = sbr.rel (0) target = $region13
    $region12: #{tpu_custom_call.1} parent=1 // pred_region
      %46 = vsyncadd [#allocation7], 0
      %s47 = sshll.u32 %s2, 4
      %s48 = int_to_ptr.hbm [resolvable:$true] %s47
      %s49 = sshll.u32 [#allocation8], 4
      %s50 = int_to_ptr.vmem [resolvable:$true] %s49
      %55 = dma.hbm_to_vmem [thread:$0]  %s48, 256, %s50, [#allocation7], 64, 64, 4
    $region13: #{tpu_custom_call.1} parent=1 // pred_fallthru
      _
    // Predicated region
    $region14: #{tpu_custom_call.1} parent=1 // pred_check
      _
    $region15: #{tpu_custom_call.1} parent=1 // pred_check_branch
      %57 = sbr.rel (0) target = $region17
    $region16: #{tpu_custom_call.1} parent=1 // pred_region
      _
    $region17: #{tpu_custom_call.1} parent=1 // pred_fallthru
      _
    // Predicated region
    $region18: #{tpu_custom_call.1} parent=1 // pred_check
      _
    $region19: #{tpu_custom_call.1} parent=1 // pred_check_branch
      %59 = sbr.rel (0) target = $region21
    $region20: #{tpu_custom_call.1} parent=1 // pred_region
      %61 = vsyncadd [#allocation10], 0
      %s62 = sshll.u32 %s4, 4
      %s63 = int_to_ptr.hbm [resolvable:$true] %s62
      %s64 = sshll.u32 [#allocation9], 4
      %s65 = int_to_ptr.vmem [resolvable:$true] %s64
      %70 = dma.hbm_to_vmem [thread:$0]  %s63, 384, %s65, [#allocation10], 64, 64, 4
    $region21: #{tpu_custom_call.1} parent=1 // pred_fallthru
      _
    // Predicated region
    $region22: #{tpu_custom_call.1} parent=1 // pred_check
      _
    $region23: #{tpu_custom_call.1} parent=1 // pred_check_branch
      %72 = sbr.rel (0) target = $region25
    $region24: #{tpu_custom_call.1} parent=1 // pred_region
      _
    $region25: #{tpu_custom_call.1} parent=1 // pred_fallthru
      _
    // Predicated region
    $region26: #{tpu_custom_call.1} parent=1 // pred_check
      _
    $region27: #{tpu_custom_call.1} parent=1 // pred_check_branch
      %74 = sbr.rel (0) target = $region29
    $region28: #{tpu_custom_call.1} parent=1 // pred_region
      %76 = vsyncadd [#allocation10], 0
      %s77 = sshll.u32 %s6, 4
      %s78 = int_to_ptr.hbm [resolvable:$true] %s77
      %s79 = sshll.u32 [#allocation11], 4
      %s80 = int_to_ptr.vmem [resolvable:$true] %s79
      %85 = dma.hbm_to_vmem [thread:$0]  %s78, 1024, %s80, [#allocation10], 64, 64, 4
    $region29: #{tpu_custom_call.1} parent=1 // pred_fallthru
      _
    // Predicated region
    $region30: #{tpu_custom_call.1} parent=1 // pred_check
      _
    $region31: #{tpu_custom_call.1} parent=1 // pred_check_branch
      %87 = sbr.rel (0) target = $region33
    $region32: #{tpu_custom_call.1} parent=1 // pred_region
      _
    $region33: #{tpu_custom_call.1} parent=1 // pred_fallthru
      _
    // Predicated region
    $region34: #{tpu_custom_call.1} parent=1 // pred_check
      _
    $region35: #{tpu_custom_call.1} parent=1 // pred_check_branch
      %89 = sbr.rel (0) target = $region37
    $region36: #{tpu_custom_call.1} parent=1 // pred_region
      %91 = dma.done [#allocation4], 128
    $region37: #{tpu_custom_call.1} parent=1 // pred_fallthru
      _
    // Predicated region
    $region38: #{tpu_custom_call.1} parent=1 // pred_check
      _
    $region39: #{tpu_custom_call.1} parent=1 // pred_check_branch
      %93 = sbr.rel (0) target = $region41
    $region40: #{tpu_custom_call.1} parent=1 // pred_region
      %95 = dma.done [#allocation7], 128
    $region41: #{tpu_custom_call.1} parent=1 // pred_fallthru
      _
    // Predicated region
    $region42: #{tpu_custom_call.1} parent=1 // pred_check
      _
    $region43: #{tpu_custom_call.1} parent=1 // pred_check_branch
      %97 = sbr.rel (0) target = $region45
    $region44: #{tpu_custom_call.1} parent=1 // pred_region
      %99 = dma.done [#allocation7], 256
    $region45: #{tpu_custom_call.1} parent=1 // pred_fallthru
      _
    // Predicated region
    $region46: #{tpu_custom_call.1} parent=1 // pred_check
      _
    $region47: #{tpu_custom_call.1} parent=1 // pred_check_branch
      %101 = sbr.rel (0) target = $region49
    $region48: #{tpu_custom_call.1} parent=1 // pred_region
      %103 = dma.done [#allocation10], 384
    $region49: #{tpu_custom_call.1} parent=1 // pred_fallthru
      _
    // Predicated region
    $region50: #{tpu_custom_call.1} parent=1 // pred_check
      _
    $region51: #{tpu_custom_call.1} parent=1 // pred_check_branch
      %105 = sbr.rel (0) target = $region53
    $region52: #{tpu_custom_call.1} parent=1 // pred_region
      %107 = dma.done [#allocation10], 1024
    $region53: #{tpu_custom_call.1} parent=1 // pred_fallthru
      _
    %p109 = scmp.eq.s32.totalorder 0, 0
    // Predicated region
    $region54: #{tpu_custom_call.1} parent=1 // pred_check
      %p110 = pneg %p109
    $region55: #{tpu_custom_call.1} parent=1 // pred_check_branch
      %112 = sbr.rel (%p110) target = $region57
    $region56: #{tpu_custom_call.1} parent=1 // pred_region
      %113 = vst [vmem:[#allocation2] sm:$0xff] 0.0
      %114 = vst [vmem:[#allocation2 + $0x8] sm:$0xff] 0.0
    $region57: #{tpu_custom_call.1} parent=1 // pred_fallthru
      _
    %v115 = vld [vmem:[#allocation3] sm:$0xf]
    %v116 = vld [vmem:[#allocation3 + $0x4] sm:$0xf]
    %v117 = vld [vmem:[#allocation8] sm:$0xf]
    %v118 = vld [vmem:[#allocation8 + $0x4] sm:$0xf]
    %v119 = vld [vmem:[#allocation8 + $0x8] sm:$0xf]
    %v120 = vld [vmem:[#allocation8 + $0xc] sm:$0xf]
    %v121 = vld [vmem:[%s3] sm:$0x1]
    %v123 = vperm.slane %v121, 0
    %v127 = vunpack.c.l.b16 %v115
    %v128 = vunpack.c.l.b16 %v116
    %v129 = vpack.c.b16 %v128, %v127
    %v134 = vunpack.c.l.b16 %v117
    %v135 = vunpack.c.l.b16 %v118
    %v136 = vunpack.c.l.b16 %v119
    %v137 = vunpack.c.l.b16 %v120
    %v138 = vpack.c.b16 %v135, %v134
    %v139 = vpack.c.b16 %v137, %v136
    %vm142 = vcmask 261120
    %v144 = vsel %vm142, %v129, 0
    %146 = vmatpush.bf16.msra.mxu0 0
    %147 = vmatpush.bf16.msra.mxu0 0
    %148 = vmatpush.bf16.msra.mxu0 0
    %149 = vmatpush.bf16.msra.mxu0 0
    %150 = vmatpush.bf16.msra.mxu0 0
    %151 = vmatpush.bf16.msra.mxu0 0
    %152 = vmatpush.bf16.msra.mxu0 %v139
    %153 = vmatpush.bf16.msra.mxu0 %v138
    %154 = vmatmul.bf16.gmra.mxu0 %v144
    %v155 = vpop.f32.mrf.mxu0
    %v156 = vadd.f32 %v123, %v155
    %v157 = vpop.f32.mrf.mxu0
    %v158 = vadd.f32 %v123, %v157
    %159 = vdwg.mxu0
    %v160 = vld [vmem:[#allocation6] sm:$0xf]
    %v161 = vld [vmem:[#allocation6 + $0x4] sm:$0xf]
    %v162 = vld [vmem:[#allocation9] sm:$0xf]
    %v163 = vld [vmem:[#allocation9 + $0x4] sm:$0xf]
    %v164 = vld [vmem:[#allocation9 + $0x8] sm:$0xf]
    %v165 = vld [vmem:[#allocation9 + $0xc] sm:$0xf]
    %v166 = vld [vmem:[#allocation9 + $0x10] sm:$0xf]
    %v167 = vld [vmem:[#allocation9 + $0x14] sm:$0xf]
    %v168 = vld [vmem:[%s5] sm:$0x1]
    %v170 = vperm.slane %v168, 0
    %v174 = vunpack.c.l.b16 %v160
    %v175 = vunpack.c.l.b16 %v161
    %v176 = vpack.c.b16 %v175, %v174
    %v183 = vunpack.c.l.b16 %v162
    %v184 = vunpack.c.l.b16 %v163
    %v185 = vunpack.c.l.b16 %v164
    %v186 = vunpack.c.l.b16 %v165
    %v187 = vunpack.c.l.b16 %v166
    %v188 = vunpack.c.l.b16 %v167
    %v189 = vpack.c.b16 %v184, %v183
    %v190 = vpack.c.b16 %v186, %v185
    %v191 = vpack.c.b16 %v188, %v187
    %vm195 = vcmask 392192
    %v197 = vsel %vm195, %v176, 0
    %199 = vmatpush.bf16.msra.mxu0 0
    %200 = vmatpush.bf16.msra.mxu0 0
    %201 = vmatpush.bf16.msra.mxu0 0
    %202 = vmatpush.bf16.msra.mxu0 0
    %203 = vmatpush.bf16.msra.mxu0 0
    %204 = vmatpush.bf16.msra.mxu0 %v191
    %205 = vmatpush.bf16.msra.mxu0 %v190
    %206 = vmatpush.bf16.msra.mxu0 %v189
    %207 = vmatmul.bf16.gmra.mxu0 %v197
    %v208 = vpop.f32.mrf.mxu0
    %v209 = vadd.f32 %v170, %v208
    %v210 = vpop.f32.mrf.mxu0
    %v211 = vadd.f32 %v170, %v210
    %212 = vdwg.mxu0
    %v213 = vmul.f32 %v156, %v209
    %v214 = vmul.f32 %v158, %v211
    %v215 = vpack.c.bf16 %v214, %v213
    %v216 = vunpack.c.l.bf16 %v215
    %v217 = vunpack.c.h.bf16 %v215
    %v218 = vtanh.pop %v216
    %v219 = vtanh.pop %v217
    %v220 = vpack.c.bf16 %v219, %v218
    %v221 = vld [vmem:[#allocation2] sm:$0xff]
    %v222 = vld [vmem:[#allocation2 + $0x8] sm:$0xff]
    %v223 = vld [vmem:[#allocation11] sm:$0xf]
    %v224 = vld [vmem:[#allocation11 + $0x4] sm:$0xf]
    %v225 = vld [vmem:[#allocation11 + $0x8] sm:$0xf]
    %v226 = vld [vmem:[#allocation11 + $0xc] sm:$0xf]
    %v227 = vld [vmem:[#allocation11 + $0x10] sm:$0xf]
    %v228 = vld [vmem:[#allocation11 + $0x14] sm:$0xf]
    %v229 = vld [vmem:[#allocation11 + $0x18] sm:$0xf]
    %v230 = vld [vmem:[#allocation11 + $0x1c] sm:$0xf]
    %v231 = vld [vmem:[#allocation11 + $0x20] sm:$0xf]
    %v232 = vld [vmem:[#allocation11 + $0x24] sm:$0xf]
    %v233 = vld [vmem:[#allocation11 + $0x28] sm:$0xf]
    %v234 = vld [vmem:[#allocation11 + $0x2c] sm:$0xf]
    %v235 = vld [vmem:[#allocation11 + $0x30] sm:$0xf]
    %v236 = vld [vmem:[#allocation11 + $0x34] sm:$0xf]
    %v237 = vld [vmem:[#allocation11 + $0x38] sm:$0xf]
    %v238 = vld [vmem:[#allocation11 + $0x3c] sm:$0xf]
    %v255 = vunpack.c.l.b16 %v223
    %v256 = vunpack.c.l.b16 %v224
    %v257 = vunpack.c.l.b16 %v225
    %v258 = vunpack.c.l.b16 %v226
    %v259 = vunpack.c.l.b16 %v227
    %v260 = vunpack.c.l.b16 %v228
    %v261 = vunpack.c.l.b16 %v229
    %v262 = vunpack.c.l.b16 %v230
    %v263 = vunpack.c.l.b16 %v231
    %v264 = vunpack.c.l.b16 %v232
    %v265 = vunpack.c.l.b16 %v233
    %v266 = vunpack.c.l.b16 %v234
    %v267 = vunpack.c.l.b16 %v235
    %v268 = vunpack.c.l.b16 %v236
    %v269 = vunpack.c.l.b16 %v237
    %v270 = vunpack.c.l.b16 %v238
    %v271 = vpack.c.b16 %v256, %v255
    %v272 = vpack.c.b16 %v258, %v257
    %v273 = vpack.c.b16 %v260, %v259
    %v274 = vpack.c.b16 %v262, %v261
    %v275 = vpack.c.b16 %v264, %v263
    %v276 = vpack.c.b16 %v266, %v265
    %v277 = vpack.c.b16 %v268, %v267
    %v278 = vpack.c.b16 %v270, %v269
    %287 = vmatpush.bf16.msra.mxu0 %v278
    %288 = vmatpush.bf16.msra.mxu0 %v277
    %289 = vmatpush.bf16.msra.mxu0 %v276
    %290 = vmatpush.bf16.msra.mxu0 %v275
    %291 = vmatpush.bf16.msra.mxu0 %v274
    %292 = vmatpush.bf16.msra.mxu0 %v273
    %293 = vmatpush.bf16.msra.mxu0 %v272
    %294 = vmatpush.bf16.msra.mxu0 %v271
    %295 = vmatmul.bf16.gmra.mxu0 %v220
    %v296 = vpop.f32.mrf.mxu0
    %v297 = vadd.f32 0.0, %v296
    %v298 = vpop.f32.mrf.mxu0
    %v299 = vadd.f32 0.0, %v298
    %300 = vdwg.mxu0
    %v301 = vadd.f32 %v221, %v297
    %v302 = vadd.f32 %v222, %v299
    %303 = vst [vmem:[#allocation2] sm:$0xff] %v301
    %304 = vst [vmem:[#allocation2 + $0x8] sm:$0xff] %v302
    // Predicated region
    $region58: #{tpu_custom_call.1} parent=1 // pred_check
      %p305 = pneg %p109
    $region59: #{tpu_custom_call.1} parent=1 // pred_check_branch
      %307 = sbr.rel (%p305) target = $region61
    $region60: #{tpu_custom_call.1} parent=1 // pred_region
      %v308 = vld [vmem:[#allocation2] sm:$0xff]
      %v309 = vld [vmem:[#allocation2 + $0x8] sm:$0xff]
      %v310 = vld [vmem:[%s7] sm:$0x1]
      %v312 = vperm.slane %v310, 0
      %v314 = vadd.f32 %v308, %v312
      %v315 = vadd.f32 %v309, %v312
      %v316 = vmax.f32 %v314, 0.0
      %v317 = vmax.f32 %v315, 0.0
      %318 = vst [vmem:[#allocation12] sm:$0xff] %v316
      %319 = vst [vmem:[#allocation12 + $0x8] sm:$0xff] %v317
    $region61: #{tpu_custom_call.1} parent=1 // pred_fallthru
      _
    // Predicated region
    $region62: #{tpu_custom_call.1} parent=1 // pred_check
      _
    $region63: #{tpu_custom_call.1} parent=1 // pred_check_branch
      %321 = sbr.rel (0) target = $region65
    $region64: #{tpu_custom_call.1} parent=1 // pred_region
      %323 = vsyncadd [#allocation5], 0
      %s324 = sshll.u32 [#allocation12], 4
      %s325 = int_to_ptr.vmem [resolvable:$true] %s324
      %s326 = sshll.u32 %s8, 4
      %s327 = int_to_ptr.hbm [resolvable:$true] %s326
      %332 = dma.vmem_to_hbm [thread:$0]  %s325, 256, %s327, [#allocation5], 128, 128, 8
    $region65: #{tpu_custom_call.1} parent=1 // pred_fallthru
      _
    // Predicated region
    $region66: #{tpu_custom_call.1} parent=1 // pred_check
      _
    $region67: #{tpu_custom_call.1} parent=1 // pred_check_branch
      %334 = sbr.rel (0) target = $region69
    $region68: #{tpu_custom_call.1} parent=1 // pred_region
      %336 = dma.done [#allocation5], 256
    $region69: #{tpu_custom_call.1} parent=1 // pred_fallthru
      _
    %337 = vsyncpa [#allocation4], 1
    %338 = vsyncpa [#allocation7], 1
    %339 = vsyncpa [#allocation10], 1
    %340 = vsyncpa [#allocation5], 1

// kernel: tpu_custom_call.1
$region0: #{tpu_custom_call.1}
  #allocation0 [shape = 'u32[]', space=smem, size = 0x4, offset = 0x4, fixed_abs, tag = 'smem constant byte address 0x4 - core index']
  #allocation1 [shape = 'u32[72,128]{1,0:T(1,128)}', space=vmem, size = 0x9000, scoped, tag = 'internal scratch']
  #allocation2 [shape = 'f32[16,128]{1,0:T(8,128)}', space=vmem, size = 0x2000, scoped, tag = 'scratch operand']
  %s0 = inlined_call_operand.hbm [shape: bf16[16,32], index: 0, kind: input, shape index: {}]
  %s1 = inlined_call_operand.hbm [shape: bf16[16,48], index: 1, kind: input, shape index: {}]
  %s2 = inlined_call_operand.hbm [shape: bf16[32,128], index: 2, kind: input, shape index: {}]
  %s3 = inlined_call_operand.vmem [shape: f32[1,128], index: 3, kind: input, shape index: {}]
  %s4 = inlined_call_operand.hbm [shape: bf16[48,128], index: 4, kind: input, shape index: {}]
  %s5 = inlined_call_operand.vmem [shape: f32[1,128], index: 5, kind: input, shape index: {}]
  %s6 = inlined_call_operand.hbm [shape: bf16[128,128], index: 6, kind: input, shape index: {}]
  %s7 = inlined_call_operand.vmem [shape: f32[1,128], index: 7, kind: input, shape index: {}]
  %s8 = inlined_call_operand.hbm [shape: f32[16,128], index: 8, kind: output, shape index: {}]
  %s9 = sld [smem:[#allocation0]]
  $region70: #{tpu_custom_call.1} parent=0
    _
  %s11 = ssub.s32 1, %s9
  %s12 = scalar_select 0, %s11, %s9
  $region1: #{tpu_custom_call.1} parent=0
    #allocation3 [shape = 'u8[4096]{0}', space=vmem, size = 0x1000, scoped, tag = 'input window, operand 0, single buffered']
    #allocation4 [shape = 's32[1]{0}', space=sflag, size = 0x4, scoped, tag = 'scoped memory for tpu_custom_call.1']
    #allocation5 [shape = 's32[1]{0}', space=sflag, size = 0x4, scoped, tag = 'scoped memory for tpu_custom_call.1']
    #allocation6 [shape = 'u8[4096]{0}', space=vmem, size = 0x1000, scoped, tag = 'input window, operand 1, single buffered']
    #allocation7 [shape = 's32[1]{0}', space=sflag, size = 0x4, scoped, tag = 'scoped memory for tpu_custom_call.1']
    #allocation8 [shape = 'u8[8192]{0}', space=vmem, size = 0x2000, scoped, tag = 'input window, operand 2, single buffered']
    #allocation9 [shape = 'u8[12288]{0}', space=vmem, size = 0x3000, scoped, tag = 'input window, operand 4, single buffered']
    #allocation10 [shape = 's32[1]{0}', space=sflag, size = 0x4, scoped, tag = 'scoped memory for tpu_custom_call.1']
    #allocation11 [shape = 'u8[32768]{0}', space=vmem, size = 0x8000, scoped, tag = 'input window, operand 6, single buffered']
    #allocation12 [shape = 'u8[8192]{0}', space=vmem, size = 0x2000, scoped, tag = 'output window, operand 0, single buffered']
    %13 = vsyncpa [#allocation4], 0
    %14 = vsyncpa [#allocation7], 0
    %15 = vsyncpa [#allocation10], 0
    %16 = vsyncpa [#allocation5], 0
    // Predicated region
    $region2: #{tpu_custom_call.1} parent=1 // pred_check
      _
    $region3: #{tpu_custom_call.1} parent=1 // pred_check_branch
      %18 = sbr.rel (0) target = $region5
    $region4: #{tpu_custom_call.1} parent=1 // pred_region
      %20 = vsyncadd [#allocation4], 0
      %s21 = sshll.u32 %s0, 4
      %s22 = int_to_ptr.hbm [resolvable:$true] %s21
      %s23 = sshll.u32 [#allocation3], 4
      %s24 = int_to_ptr.vmem [resolvable:$true] %s23
      %29 = dma.hbm_to_vmem [thread:$0]  %s22, 128, %s24, [#allocation4], 64, 64, 4
    $region5: #{tpu_custom_call.1} parent=1 // pred_fallthru
      _
    // Predicated region
    $region6: #{tpu_custom_call.1} parent=1 // pred_check
      _
    $region7: #{tpu_custom_call.1} parent=1 // pred_check_branch
      %31 = sbr.rel (0) target = $region9
    $region8: #{tpu_custom_call.1} parent=1 // pred_region
      %33 = vsyncadd [#allocation7], 0
      %s34 = sshll.u32 %s1, 4
      %s35 = int_to_ptr.hbm [resolvable:$true] %s34
      %s36 = sshll.u32 [#allocation6], 4
      %s37 = int_to_ptr.vmem [resolvable:$true] %s36
      %42 = dma.hbm_to_vmem [thread:$0]  %s35, 128, %s37, [#allocation7], 64, 64, 4
    $region9: #{tpu_custom_call.1} parent=1 // pred_fallthru
      _
    // Predicated region
    $region10: #{tpu_custom_call.1} parent=1 // pred_check
      _
    $region11: #{tpu_custom_call.1} parent=1 // pred_check_branch
      %44 = sbr.rel (0) target = $region13
    $region12: #{tpu_custom_call.1} parent=1 // pred_region
      %46 = vsyncadd [#allocation7], 0
      %s47 = sshll.u32 %s2, 4
      %s48 = int_to_ptr.hbm [resolvable:$true] %s47
      %s49 = sshll.u32 [#allocation8], 4
      %s50 = int_to_ptr.vmem [resolvable:$true] %s49
      %55 = dma.hbm_to_vmem [thread:$0]  %s48, 256, %s50, [#allocation7], 64, 64, 4
    $region13: #{tpu_custom_call.1} parent=1 // pred_fallthru
      _
    // Predicated region
    $region14: #{tpu_custom_call.1} parent=1 // pred_check
      _
    $region15: #{tpu_custom_call.1} parent=1 // pred_check_branch
      %57 = sbr.rel (0) target = $region17
    $region16: #{tpu_custom_call.1} parent=1 // pred_region
      _
    $region17: #{tpu_custom_call.1} parent=1 // pred_fallthru
      _
    // Predicated region
    $region18: #{tpu_custom_call.1} parent=1 // pred_check
      _
    $region19: #{tpu_custom_call.1} parent=1 // pred_check_branch
      %59 = sbr.rel (0) target = $region21
    $region20: #{tpu_custom_call.1} parent=1 // pred_region
      %61 = vsyncadd [#allocation10], 0
      %s62 = sshll.u32 %s4, 4
      %s63 = int_to_ptr.hbm [resolvable:$true] %s62
      %s64 = sshll.u32 [#allocation9], 4
      %s65 = int_to_ptr.vmem [resolvable:$true] %s64
      %70 = dma.hbm_to_vmem [thread:$0]  %s63, 384, %s65, [#allocation10], 64, 64, 4
    $region21: #{tpu_custom_call.1} parent=1 // pred_fallthru
      _
    // Predicated region
    $region22: #{tpu_custom_call.1} parent=1 // pred_check
      _
    $region23: #{tpu_custom_call.1} parent=1 // pred_check_branch
      %72 = sbr.rel (0) target = $region25
    $region24: #{tpu_custom_call.1} parent=1 // pred_region
      _
    $region25: #{tpu_custom_call.1} parent=1 // pred_fallthru
      _
    // Predicated region
    $region26: #{tpu_custom_call.1} parent=1 // pred_check
      _
    $region27: #{tpu_custom_call.1} parent=1 // pred_check_branch
      %74 = sbr.rel (0) target = $region29
    $region28: #{tpu_custom_call.1} parent=1 // pred_region
      %76 = vsyncadd [#allocation10], 0
      %s77 = sshll.u32 %s6, 4
      %s78 = int_to_ptr.hbm [resolvable:$true] %s77
      %s79 = sshll.u32 [#allocation11], 4
      %s80 = int_to_ptr.vmem [resolvable:$true] %s79
      %85 = dma.hbm_to_vmem [thread:$0]  %s78, 1024, %s80, [#allocation10], 64, 64, 4
    $region29: #{tpu_custom_call.1} parent=1 // pred_fallthru
      _
    // Predicated region
    $region30: #{tpu_custom_call.1} parent=1 // pred_check
      _
    $region31: #{tpu_custom_call.1} parent=1 // pred_check_branch
      %87 = sbr.rel (0) target = $region33
    $region32: #{tpu_custom_call.1} parent=1 // pred_region
      _
    $region33: #{tpu_custom_call.1} parent=1 // pred_fallthru
      _
    // Predicated region
    $region34: #{tpu_custom_call.1} parent=1 // pred_check
      _
    $region35: #{tpu_custom_call.1} parent=1 // pred_check_branch
      %89 = sbr.rel (0) target = $region37
    $region36: #{tpu_custom_call.1} parent=1 // pred_region
      %91 = dma.done [#allocation4], 128
    $region37: #{tpu_custom_call.1} parent=1 // pred_fallthru
      _
    // Predicated region
    $region38: #{tpu_custom_call.1} parent=1 // pred_check
      _
    $region39: #{tpu_custom_call.1} parent=1 // pred_check_branch
      %93 = sbr.rel (0) target = $region41
    $region40: #{tpu_custom_call.1} parent=1 // pred_region
      %95 = dma.done [#allocation7], 128
    $region41: #{tpu_custom_call.1} parent=1 // pred_fallthru
      _
    // Predicated region
    $region42: #{tpu_custom_call.1} parent=1 // pred_check
      _
    $region43: #{tpu_custom_call.1} parent=1 // pred_check_branch
      %97 = sbr.rel (0) target = $region45
    $region44: #{tpu_custom_call.1} parent=1 // pred_region
      %99 = dma.done [#allocation7], 256
    $region45: #{tpu_custom_call.1} parent=1 // pred_fallthru
      _
    // Predicated region
    $region46: #{tpu_custom_call.1} parent=1 // pred_check
      _
    $region47: #{tpu_custom_call.1} parent=1 // pred_check_branch
      %101 = sbr.rel (0) target = $region49
    $region48: #{tpu_custom_call.1} parent=1 // pred_region
      %103 = dma.done [#allocation10], 384
    $region49: #{tpu_custom_call.1} parent=1 // pred_fallthru
      _
    // Predicated region
    $region50: #{tpu_custom_call.1} parent=1 // pred_check
      _
    $region51: #{tpu_custom_call.1} parent=1 // pred_check_branch
      %105 = sbr.rel (0) target = $region53
    $region52: #{tpu_custom_call.1} parent=1 // pred_region
      %107 = dma.done [#allocation10], 1024
    $region53: #{tpu_custom_call.1} parent=1 // pred_fallthru
      _
    %p109 = scmp.eq.s32.totalorder 0, 0
    // Predicated region
    $region54: #{tpu_custom_call.1} parent=1 // pred_check
      %p110 = pneg %p109
    $region55: #{tpu_custom_call.1} parent=1 // pred_check_branch
      %112 = sbr.rel (%p110) target = $region57
    $region56: #{tpu_custom_call.1} parent=1 // pred_region
      %113 = vst [vmem:[#allocation2] sm:$0xff] 0.0
      %114 = vst [vmem:[#allocation2 + $0x8] sm:$0xff] 0.0
    $region57: #{tpu_custom_call.1} parent=1 // pred_fallthru
      _
    %v115 = vld [vmem:[#allocation3] sm:$0xf]
    %v116 = vld [vmem:[#allocation3 + $0x4] sm:$0xf]
    %v117 = vld [vmem:[#allocation8] sm:$0xf]
    %v118 = vld [vmem:[#allocation8 + $0x4] sm:$0xf]
    %v119 = vld [vmem:[#allocation8 + $0x8] sm:$0xf]
    %v120 = vld [vmem:[#allocation8 + $0xc] sm:$0xf]
    %v121 = vld [vmem:[%s3] sm:$0x1]
    %v123 = vperm.slane %v121, 0
    %v127 = vunpack.c.l.b16 %v115
    %v128 = vunpack.c.l.b16 %v116
    %v129 = vpack.c.b16 %v128, %v127
    %v134 = vunpack.c.l.b16 %v117
    %v135 = vunpack.c.l.b16 %v118
    %v136 = vunpack.c.l.b16 %v119
    %v137 = vunpack.c.l.b16 %v120
    %v138 = vpack.c.b16 %v135, %v134
    %v139 = vpack.c.b16 %v137, %v136
    %vm142 = vcmask 261120
    %v144 = vsel %vm142, %v129, 0
    %146 = vmatpush.bf16.msra.mxu0 0
    %147 = vmatpush.bf16.msra.mxu0 0
    %148 = vmatpush.bf16.msra.mxu0 0
    %149 = vmatpush.bf16.msra.mxu0 0
    %150 = vmatpush.bf16.msra.mxu0 0
    %151 = vmatpush.bf16.msra.mxu0 0
    %152 = vmatpush.bf16.msra.mxu0 %v139
    %153 = vmatpush.bf16.msra.mxu0 %v138
    %154 = vmatmul.bf16.gmra.mxu0 %v144
    %v155 = vpop.f32.mrf.mxu0
    %v156 = vadd.f32 %v123, %v155
    %v157 = vpop.f32.mrf.mxu0
    %v158 = vadd.f32 %v123, %v157
    %159 = vdwg.mxu0
    %v160 = vld [vmem:[#allocation6] sm:$0xf]
    %v161 = vld [vmem:[#allocation6 + $0x4] sm:$0xf]
    %v162 = vld [vmem:[#allocation9] sm:$0xf]
    %v163 = vld [vmem:[#allocation9 + $0x4] sm:$0xf]
    %v164 = vld [vmem:[#allocation9 + $0x8] sm:$0xf]
    %v165 = vld [vmem:[#allocation9 + $0xc] sm:$0xf]
    %v166 = vld [vmem:[#allocation9 + $0x10] sm:$0xf]
    %v167 = vld [vmem:[#allocation9 + $0x14] sm:$0xf]
    %v168 = vld [vmem:[%s5] sm:$0x1]
    %v170 = vperm.slane %v168, 0
    %v174 = vunpack.c.l.b16 %v160
    %v175 = vunpack.c.l.b16 %v161
    %v176 = vpack.c.b16 %v175, %v174
    %v183 = vunpack.c.l.b16 %v162
    %v184 = vunpack.c.l.b16 %v163
    %v185 = vunpack.c.l.b16 %v164
    %v186 = vunpack.c.l.b16 %v165
    %v187 = vunpack.c.l.b16 %v166
    %v188 = vunpack.c.l.b16 %v167
    %v189 = vpack.c.b16 %v184, %v183
    %v190 = vpack.c.b16 %v186, %v185
    %v191 = vpack.c.b16 %v188, %v187
    %vm195 = vcmask 392192
    %v197 = vsel %vm195, %v176, 0
    %199 = vmatpush.bf16.msra.mxu0 0
    %200 = vmatpush.bf16.msra.mxu0 0
    %201 = vmatpush.bf16.msra.mxu0 0
    %202 = vmatpush.bf16.msra.mxu0 0
    %203 = vmatpush.bf16.msra.mxu0 0
    %204 = vmatpush.bf16.msra.mxu0 %v191
    %205 = vmatpush.bf16.msra.mxu0 %v190
    %206 = vmatpush.bf16.msra.mxu0 %v189
    %207 = vmatmul.bf16.gmra.mxu0 %v197
    %v208 = vpop.f32.mrf.mxu0
    %v209 = vadd.f32 %v170, %v208
    %v210 = vpop.f32.mrf.mxu0
    %v211 = vadd.f32 %v170, %v210
    %212 = vdwg.mxu0
    %v213 = vmul.f32 %v156, %v209
    %v214 = vmul.f32 %v158, %v211
    %v215 = vpack.c.bf16 %v214, %v213
    %v216 = vunpack.c.l.bf16 %v215
    %v217 = vunpack.c.h.bf16 %v215
    %v218 = vtanh.pop %v216
    %v219 = vtanh.pop %v217
    %v220 = vpack.c.bf16 %v219, %v218
    %v221 = vld [vmem:[#allocation2] sm:$0xff]
    %v222 = vld [vmem:[#allocation2 + $0x8] sm:$0xff]
    %v223 = vld [vmem:[#allocation11] sm:$0xf]
    %v224 = vld [vmem:[#allocation11 + $0x4] sm:$0xf]
    %v225 = vld [vmem:[#allocation11 + $0x8] sm:$0xf]
    %v226 = vld [vmem:[#allocation11 + $0xc] sm:$0xf]
    %v227 = vld [vmem:[#allocation11 + $0x10] sm:$0xf]
    %v228 = vld [vmem:[#allocation11 + $0x14] sm:$0xf]
    %v229 = vld [vmem:[#allocation11 + $0x18] sm:$0xf]
    %v230 = vld [vmem:[#allocation11 + $0x1c] sm:$0xf]
    %v231 = vld [vmem:[#allocation11 + $0x20] sm:$0xf]
    %v232 = vld [vmem:[#allocation11 + $0x24] sm:$0xf]
    %v233 = vld [vmem:[#allocation11 + $0x28] sm:$0xf]
    %v234 = vld [vmem:[#allocation11 + $0x2c] sm:$0xf]
    %v235 = vld [vmem:[#allocation11 + $0x30] sm:$0xf]
    %v236 = vld [vmem:[#allocation11 + $0x34] sm:$0xf]
    %v237 = vld [vmem:[#allocation11 + $0x38] sm:$0xf]
    %v238 = vld [vmem:[#allocation11 + $0x3c] sm:$0xf]
    %v255 = vunpack.c.l.b16 %v223
    %v256 = vunpack.c.l.b16 %v224
    %v257 = vunpack.c.l.b16 %v225
    %v258 = vunpack.c.l.b16 %v226
    %v259 = vunpack.c.l.b16 %v227
    %v260 = vunpack.c.l.b16 %v228
    %v261 = vunpack.c.l.b16 %v229
    %v262 = vunpack.c.l.b16 %v230
    %v263 = vunpack.c.l.b16 %v231
    %v264 = vunpack.c.l.b16 %v232
    %v265 = vunpack.c.l.b16 %v233
    %v266 = vunpack.c.l.b16 %v234
    %v267 = vunpack.c.l.b16 %v235
    %v268 = vunpack.c.l.b16 %v236
    %v269 = vunpack.c.l.b16 %v237
    %v270 = vunpack.c.l.b16 %v238
    %v271 = vpack.c.b16 %v256, %v255
    %v272 = vpack.c.b16 %v258, %v257
    %v273 = vpack.c.b16 %v260, %v259
    %v274 = vpack.c.b16 %v262, %v261
    %v275 = vpack.c.b16 %v264, %v263
    %v276 = vpack.c.b16 %v266, %v265
    %v277 = vpack.c.b16 %v268, %v267
    %v278 = vpack.c.b16 %v270, %v269
    %287 = vmatpush.bf16.msra.mxu0 %v278
    %288 = vmatpush.bf16.msra.mxu0 %v277
    %289 = vmatpush.bf16.msra.mxu0 %v276
    %290 = vmatpush.bf16.msra.mxu0 %v275
    %291 = vmatpush.bf16.msra.mxu0 %v274
    %292 = vmatpush.bf16.msra.mxu0 %v273
    %293 = vmatpush.bf16.msra.mxu0 %v272
    %294 = vmatpush.bf16.msra.mxu0 %v271
    %295 = vmatmul.bf16.gmra.mxu0 %v220
    %v296 = vpop.f32.mrf.mxu0
    %v297 = vadd.f32 0.0, %v296
    %v298 = vpop.f32.mrf.mxu0
    %v299 = vadd.f32 0.0, %v298
    %300 = vdwg.mxu0
    %v301 = vadd.f32 %v221, %v297
    %v302 = vadd.f32 %v222, %v299
    %303 = vst [vmem:[#allocation2] sm:$0xff] %v301
    %304 = vst [vmem:[#allocation2 + $0x8] sm:$0xff] %v302
    // Predicated region
    $region58: #{tpu_custom_call.1} parent=1 // pred_check
      %p305 = pneg %p109
    $region59: #{tpu_custom_call.1} parent=1 // pred_check_branch
      %307 = sbr.rel (%p305) target = $region61
    $region60: #{tpu_custom_call.1} parent=1 // pred_region
      %v308 = vld [vmem:[#allocation2] sm:$0xff]
      %v309 = vld [vmem:[#allocation2 + $0x8] sm:$0xff]
      %v310 = vld [vmem:[%s7] sm:$0x1]
      %v312 = vperm.slane %v310, 0
      %v314 = vadd.f32 %v308, %v312
      %v315 = vadd.f32 %v309, %v312
      %v316 = vmax.f32 %v314, 0.0
      %v317 = vmax.f32 %v315, 0.0
      %318 = vst [vmem:[#allocation12] sm:$0xff] %v316
      %319 = vst [vmem:[#allocation12 + $0x8] sm:$0xff] %v317
    $region61: #{tpu_custom_call.1} parent=1 // pred_fallthru
      _
    // Predicated region
    $region62: #{tpu_custom_call.1} parent=1 // pred_check
      _
    $region63: #{tpu_custom_call.1} parent=1 // pred_check_branch
      %321 = sbr.rel (0) target = $region65
    $region64: #{tpu_custom_call.1} parent=1 // pred_region
      %323 = vsyncadd [#allocation5], 0
      %s324 = sshll.u32 [#allocation12], 4
      %s325 = int_to_ptr.vmem [resolvable:$true] %s324
      %s326 = sshll.u32 %s8, 4
      %s327 = int_to_ptr.hbm [resolvable:$true] %s326
      %332 = dma.vmem_to_hbm [thread:$0]  %s325, 256, %s327, [#allocation5], 128, 128, 8
    $region65: #{tpu_custom_call.1} parent=1 // pred_fallthru
      _
    // Predicated region
    $region66: #{tpu_custom_call.1} parent=1 // pred_check
      _
    $region67: #{tpu_custom_call.1} parent=1 // pred_check_branch
      %334 = sbr.rel (0) target = $region69
    $region68: #{tpu_custom_call.1} parent=1 // pred_region
      %336 = dma.done [#allocation5], 256
    $region69: #{tpu_custom_call.1} parent=1 // pred_fallthru
      _
    %337 = vsyncpa [#allocation4], 1
    %338 = vsyncpa [#allocation7], 1
    %339 = vsyncpa [#allocation10], 1
    %340 = vsyncpa [#allocation5], 1

</llo_original>
